<compile_context>
chip_gen: v7x
topology: tpu7x:2x2x1
jax: 0.10.0
libtpu: 0.0.40
codegen_flags: <defaults>
</compile_context>

<pallas_src>
import jax
import jax.numpy as jnp
from jax.experimental import pallas as pl
from jax.experimental.pallas import tpu as pltpu

# Lane widths tried for a pad-free factorization (all multiples of 128).
_LANE_CANDIDATES = (2048, 1024, 512, 384, 256, 128)


def _sublane_align(itemsize: int) -> int:
    # Native sublane tiling: f32 -> 8, bf16 -> 16, int8/fp8 -> 32.
    return max(8, 32 // itemsize)


def _target_block_bytes() -> int:
    kind = ""
    try:
        kind = jax.devices()[0].device_kind.lower()
    except Exception:
        pass
    if "v7" in kind or "tpu7" in kind or "tpu 7" in kind:
        # v7x: 3.2 TB/s HBM -> 4 MiB blocks keep the ~600-cycle per-step
        # overhead <~12%; 2 (dbl-buf) * 2 (in+out) * 4 MiB = 16 MiB VMEM.
        return 4 * 1024 * 1024
    # v6e / v5e (and unknown chips): 2 MiB blocks -> 8 MiB of buffers.
    return 2 * 1024 * 1024


def _mish_kernel(x_ref, o_ref):
    x = x_ref[...].astype(jnp.float32)
    # tanh(softplus(x)) == ((1+t)^2 - 1) / ((1+t)^2 + 1) == (t^2+2t)/(t^2+2t+2)
    # with t = exp(x); clamp the exponent at 20 to avoid overflow.  At the
    # clamp, num + 2 rounds to num in f32, so ratio == 1.0 exactly and
    # y == x for x >= 20 -- torch's softplus(threshold=20) branch for free.
    t = jnp.exp(jnp.minimum(x, 20.0))
    num = t * (t + 2.0)
    den = num + 2.0
    if o_ref.dtype == jnp.float32:
        # Full-precision divide: few-ulp match to tanh(softplus(x)) for f32 I/O.
        ratio = num / den
    else:
        # bf16 (or other low-precision) output: approx EUP reciprocal is plenty.
        ratio = num * pl.reciprocal(den, approx=True)
    o_ref[...] = (x * ratio).astype(o_ref.dtype)


def mish(x: jax.Array) -> jax.Array:
    """Elementwise Mish over any-shaped tensor via a tiled Pallas TPU kernel."""
    orig_shape = x.shape
    dtype = x.dtype
    total = int(x.size)
    itemsize = jnp.dtype(dtype).itemsize
    sub = _sublane_align(itemsize)

    flat = x.reshape(-1)

    # Pad-free lane-dense factorization whenever possible (no extra HBM passes).
    lane = next((l for l in _LANE_CANDIDATES if total % l == 0), None)
    if lane is not None:
        rows = total // lane
        x2d = flat.reshape(rows, lane)
        tail_pad = 0
    else:
        # Rare fallback: total is not a multiple of 128 -> pad the tail.
        lane = 512
        rows = pl.cdiv(total, lane)
        rows = ((rows + sub - 1) // sub) * sub
        tail_pad = rows * lane - total
        x2d = jnp.pad(flat, (0, tail_pad)).reshape(rows, lane)

    # Per-generation block rows (dtype-aware sublane alignment).
    tr = _target_block_bytes() // (lane * itemsize)
    tr = max(sub, (tr // sub) * sub)
    if rows <= tr:
        tr = rows  # full-extent block: always legal regardless of alignment
    grid = (pl.cdiv(rows, tr),)

    out = pl.pallas_call(
        _mish_kernel,
        out_shape=jax.ShapeDtypeStruct((rows, lane), dtype),
        grid=grid,
        in_specs=[pl.BlockSpec((tr, lane), lambda i: (i, 0))],
        out_specs=pl.BlockSpec((tr, lane), lambda i: (i, 0)),
        compiler_params=pltpu.CompilerParams(
            dimension_semantics=("parallel",),
            vmem_limit_bytes=32 * 1024 * 1024,
        ),
        cost_estimate=pl.CostEstimate(
            flops=7 * total,
            transcendentals=total,
            bytes_accessed=2 * total * itemsize,
        ),
    )(x2d)

    if tail_pad:
        return out.reshape(-1)[:total].reshape(orig_shape)
    return out.reshape(orig_shape)


if __name__ == "__main__":
    key = jax.random.PRNGKey(0)
    # Small NCHW input consistent with a conv-net activation: batch=2, C=4, 16x16.
    x = jax.random.normal(key, (2, 4, 16, 16), dtype=jnp.float32) * 3.0

    def mish_ref(v):
        v32 = v.astype(jnp.float32)
        sp = jnp.where(v32 > 20.0, v32, jnp.log1p(jnp.exp(jnp.minimum(v32, 20.0))))
        return v32 * jnp.tanh(sp)

    # f32 I/O, 128-divisible size (2*4*16*16 = 2048): pad-free fast path.
    y = mish(x)
    jax.block_until_ready(y)
    assert jnp.allclose(y, mish_ref(x), atol=1e-5, rtol=1e-5), "f32 mismatch"

    # bf16 I/O: exercises the approx-reciprocal branch.
    xb = x.astype(jnp.bfloat16)
    yb = mish(xb)
    jax.block_until_ready(yb)
    assert jnp.allclose(yb.astype(jnp.float32), mish_ref(xb),
                        atol=1e-1, rtol=2e-2), "bf16 mismatch"

    # Ragged size (3*5*7 = 105, not a multiple of 128): pad fallback path.
    xr = jax.random.normal(jax.random.PRNGKey(1), (3, 5, 7), dtype=jnp.float32)
    yr = mish(xr)
    jax.block_until_ready(yr)
    assert jnp.allclose(yr, mish_ref(xr), atol=1e-5, rtol=1e-5), "ragged mismatch"

    print("KERNEL_OK")
</pallas_src>

<mosaic_0001>
module attributes {stable_mosaic.version = 11 : i64} {
  func.func @_mish_kernel(%arg0: i32, %arg1: memref<1x2048xf32, #tpu.memory_space<vmem>>, %arg2: memref<1x2048xf32, #tpu.memory_space<vmem>>) attributes {dimension_semantics = [#tpu.dimension_semantics<parallel>], iteration_bounds = array<i64: 1>, scalar_prefetch = 0 : i64, scratch_operands = 0 : i64, tpu.core_type = #tpu.core_type<tc>, window_params = [{transform_indices = @transform_0, window_bounds = array<i64: 1, 2048>}, {transform_indices = @transform_1, window_bounds = array<i64: 1, 2048>}]} {
    %c0 = arith.constant 0 : index
    %c0_0 = arith.constant 0 : index
    %0 = vector.load %arg1[%c0, %c0_0] : memref<1x2048xf32, #tpu.memory_space<vmem>>, vector<1x2048xf32>
    %cst = arith.constant 2.000000e+01 : f32
    %1 = vector.broadcast %cst : f32 to vector<1x2048xf32>
    %2 = arith.minimumf %0, %1 : vector<1x2048xf32>
    %3 = math.exp %2 : vector<1x2048xf32>
    %cst_1 = arith.constant 2.000000e+00 : f32
    %4 = vector.broadcast %cst_1 : f32 to vector<1x2048xf32>
    %5 = arith.addf %3, %4 : vector<1x2048xf32>
    %6 = arith.mulf %3, %5 : vector<1x2048xf32>
    %cst_2 = arith.constant 2.000000e+00 : f32
    %7 = vector.broadcast %cst_2 : f32 to vector<1x2048xf32>
    %8 = arith.addf %6, %7 : vector<1x2048xf32>
    %9 = arith.divf %6, %8 : vector<1x2048xf32>
    %10 = arith.mulf %0, %9 : vector<1x2048xf32>
    %c0_3 = arith.constant 0 : index
    %c0_4 = arith.constant 0 : index
    %11 = vector.load %arg2[%c0_3, %c0_4] : memref<1x2048xf32, #tpu.memory_space<vmem>>, vector<1x2048xf32>
    tpu.vector_store %arg2[%c0_3, %c0_4], %10 {strides = array<i32>} : memref<1x2048xf32, #tpu.memory_space<vmem>>, vector<1x2048xf32>,
    return
  }
  func.func @transform_0(%arg0: i32) -> (i32, i32) {
    %c0_i32 = arith.constant 0 : i32
    %c0_i32_0 = arith.constant 0 : i32
    return %arg0, %c0_i32 : i32, i32
  }
  func.func @transform_1(%arg0: i32) -> (i32, i32) {
    %c0_i32 = arith.constant 0 : i32
    %c0_i32_0 = arith.constant 0 : i32
    return %arg0, %c0_i32 : i32, i32
  }
}

</mosaic_0001>

<llo_original>
// kernel: tpu_custom_call.1
$region0: #{tpu_custom_call.1}
  #allocation0 [shape = 'u32[]', space=smem, size = 0x4, offset = 0x4, fixed_abs, tag = 'smem constant byte address 0x4 - core index']
  #allocation1 [shape = 'u32[144,128]{1,0:T(1,128)}', space=vmem, size = 0x12000, scoped, tag = 'internal scratch']
  %s0 = inlined_call_operand.hbm [shape: f32[1,2048], index: 0, kind: input, shape index: {}]
  %s1 = inlined_call_operand.hbm [shape: f32[1,2048], index: 1, kind: output, shape index: {}]
  %s2 = sld [smem:[#allocation0]]
  $region18: #{tpu_custom_call.1} parent=0
    _
  %s4 = ssub.s32 1, %s2
  %s5 = scalar_select 0, %s4, %s2
  $region1: #{tpu_custom_call.1} parent=0
    #allocation2 [shape = 'u8[8192]{0}', space=vmem, size = 0x2000, scoped, tag = 'input window, operand 0, single buffered']
    #allocation3 [shape = 's32[1]{0}', space=sflag, size = 0x4, scoped, tag = 'scoped memory for tpu_custom_call.1']
    #allocation4 [shape = 's32[1]{0}', space=sflag, size = 0x4, scoped, tag = 'scoped memory for tpu_custom_call.1']
    #allocation5 [shape = 'u8[8192]{0}', space=vmem, size = 0x2000, scoped, tag = 'output window, operand 0, single buffered']
    %6 = vsyncpa [#allocation3], 0
    %7 = vsyncpa [#allocation4], 0
    // Predicated region
    $region2: #{tpu_custom_call.1} parent=1 // pred_check
      _
    $region3: #{tpu_custom_call.1} parent=1 // pred_check_branch
      %9 = sbr.rel (0) target = $region5
    $region4: #{tpu_custom_call.1} parent=1 // pred_region
      %s11 = ssub.s32 256, 256
      %12 = vsyncadd [#allocation3], %s11
      %s14 = sshll.u32 [#allocation2], 4
      %s15 = int_to_ptr.vmem [resolvable:$true] %s14
      %17 = dma.hbm_to_vmem [thread:$0]  %s0, 256, %s15, [#allocation3]
    $region5: #{tpu_custom_call.1} parent=1 // pred_fallthru
      _
    // Predicated region
    $region6: #{tpu_custom_call.1} parent=1 // pred_check
      _
    $region7: #{tpu_custom_call.1} parent=1 // pred_check_branch
      %19 = sbr.rel (0) target = $region9
    $region8: #{tpu_custom_call.1} parent=1 // pred_region
      %20 = dma.done [#allocation3], 256
    $region9: #{tpu_custom_call.1} parent=1 // pred_fallthru
      _
    %v21 = vld [vmem:[#allocation2] sm:$0xff]
    %v22 = vld [vmem:[#allocation2 + $0x8] sm:$0xff]
    %v23 = vmin.f32 %v21, 20.0
    %v24 = vmin.f32 %v22, 20.0
    %v25 = vmul.f32 %v23, 1.442695
    %v26 = vpow.pop %v25
    %v27 = vmul.f32 %v24, 1.442695
    %v28 = vpow.pop %v27
    %v29 = vadd.f32 %v26, 2.0
    %v30 = vadd.f32 %v28, 2.0
    %v31 = vmul.f32 %v26, %v29
    %v32 = vmul.f32 %v28, %v30
    %v33 = vadd.f32 %v31, 2.0
    %v34 = vadd.f32 %v32, 2.0
    %v35 = vrcp.pop %v33
    %v36 = vmul.f32 %v31, %v35
    %v37 = vrcp.pop %v34
    %v38 = vmul.f32 %v32, %v37
    %v39 = vmul.f32 %v21, %v36
    %v40 = vmul.f32 %v22, %v38
    %41 = vst [vmem:[#allocation5] sm:$0xff] %v39
    %42 = vst [vmem:[#allocation5 + $0x8] sm:$0xff] %v40
    // Predicated region
    $region10: #{tpu_custom_call.1} parent=1 // pred_check
      _
    $region11: #{tpu_custom_call.1} parent=1 // pred_check_branch
      %44 = sbr.rel (0) target = $region13
    $region12: #{tpu_custom_call.1} parent=1 // pred_region
      %s46 = ssub.s32 256, 256
      %47 = vsyncadd [#allocation4], %s46
      %s49 = sshll.u32 [#allocation5], 4
      %s50 = int_to_ptr.vmem [resolvable:$true] %s49
      %52 = dma.vmem_to_hbm [thread:$0]  %s50, 256, %s1, [#allocation4]
    $region13: #{tpu_custom_call.1} parent=1 // pred_fallthru
      _
    // Predicated region
    $region14: #{tpu_custom_call.1} parent=1 // pred_check
      _
    $region15: #{tpu_custom_call.1} parent=1 // pred_check_branch
      %54 = sbr.rel (0) target = $region17
    $region16: #{tpu_custom_call.1} parent=1 // pred_region
      %55 = dma.done [#allocation4], 256
    $region17: #{tpu_custom_call.1} parent=1 // pred_fallthru
      _
    %56 = vsyncpa [#allocation3], 1
    %57 = vsyncpa [#allocation4], 1

</llo_original>
